<compile_context>
chip_gen: v7x
topology: tpu7x:2x2x1
jax: 0.10.0
libtpu: 0.0.40
codegen_flags: <defaults>
</compile_context>

<pallas_src>
import functools

import jax
import jax.numpy as jnp
import numpy as np
from jax import lax
from jax.experimental import pallas as pl
from jax.experimental.pallas import tpu as pltpu

_BIG = 9999999.0
_NEG_INF = -3.0e38
_LANE = 128


def _prep(x_ref, normalize, want_sq):
    """Load a tile, optionally L2-normalize. Returns (matmul_operand, f32_values, sq|None)."""
    raw = x_ref[...]
    xf = raw.astype(jnp.float32)
    if normalize:
        xf = xf / jnp.maximum(jnp.sqrt(jnp.sum(xf * xf, axis=1, keepdims=True)), 1e-12)
        mm = xf.astype(raw.dtype)          # normalized values back to native dtype for MXU
    else:
        mm = raw                            # native (possibly bf16) operand for the MXU
    sq = jnp.sum(xf * xf, axis=1, keepdims=True) if want_sq else None
    return mm, xf, sq


def _soft_triplet_kernel(labc_ref, labr_ref, e1b_ref, e1f_ref, *rest,
                         margin, normalize_feature, mid_hard):
    if margin is None:
        e2b_ref, e2f_ref, o_ref = rest
    else:
        (o_ref,) = rest

    tm = e1b_ref.shape[0]
    n, dp = e1f_ref.shape

    e1b_mm, _, sq1_blk = _prep(e1b_ref, normalize_feature, True)     # this row block
    e1f_mm, e1f_f, _ = _prep(e1f_ref, normalize_feature, False)      # all rows (= columns)

    sim = labc_ref[...] == labr_ref[...]                              # (tm, n) bool

    # (1, n) squared norms of the full set via a tiny MXU matmul (replaces NxN diag
    # extraction + cross-sublane reduce).
    esq_full = e1f_f * e1f_f
    sq1_row = lax.dot_general(jnp.ones((1, dp), jnp.float32), esq_full,
                              dimension_numbers=(((1,), (1,)), ((), ())),
                              preferred_element_type=jnp.float32)     # (1, n)

    gram1 = lax.dot_general(e1b_mm, e1f_mm,
                            dimension_numbers=(((1,), (1,)), ((), ())),
                            preferred_element_type=jnp.float32)       # (tm, n)
    dist1 = jnp.sqrt(jnp.maximum(sq1_blk + sq1_row - 2.0 * gram1, 1e-12))

    # Exact torch masking semantics:
    #   positives: dist          negatives: dist - 9999999     (for the positive search)
    #   positives: dist + 9999999   negatives: dist            (for the negative search)
    masked_p = jnp.where(sim, dist1, dist1 - _BIG)
    masked_n = jnp.where(sim, dist1 + _BIG, dist1)

    need_ap_idx = mid_hard or (margin is None)
    col_ids = lax.broadcasted_iota(jnp.int32, (tm, n), 1) if need_ap_idx else None

    hard_p = jnp.max(masked_p, axis=1, keepdims=True)
    ap_idx = None
    if need_ap_idx:
        ap_idx = jnp.min(jnp.where(masked_p >= hard_p, col_ids, n),
                         axis=1, keepdims=True)
    if mid_hard:
        # second entry of the descending sort: drop the first-ranked column, re-take max
        masked_p2 = jnp.where(col_ids == ap_idx, _NEG_INF, masked_p)
        hard_p = jnp.max(masked_p2, axis=1, keepdims=True)
        if margin is None:
            ap_idx = jnp.min(jnp.where(masked_p2 >= hard_p, col_ids, n),
                             axis=1, keepdims=True)

    hard_n = jnp.min(masked_n, axis=1, keepdims=True)

    # log_softmax over the (hard_p, hard_n) pair, per row.
    mx = jnp.maximum(hard_p, hard_n)
    lse = mx + jnp.log(jnp.exp(hard_p - mx) + jnp.exp(hard_n - mx))
    lp_p = hard_p - lse
    lp_n = hard_n - lse

    if margin is not None:
        loss_row = -margin * lp_p - (1.0 - margin) * lp_n
    else:
        an_idx = jnp.min(jnp.where(masked_n <= hard_n, col_ids, n),
                         axis=1, keepdims=True)
        e2b_mm, e2b_f, sq2_blk = _prep(e2b_ref, normalize_feature, True)
        e2f_mm, _, _ = _prep(e2f_ref, normalize_feature, False)
        # One-hot row gathers on the MXU; the NxN dist2 matrix is never materialized.
        oh_ap = (col_ids == ap_idx).astype(e2f_mm.dtype)
        oh_an = (col_ids == an_idx).astype(e2f_mm.dtype)
        g_ap = lax.dot_general(oh_ap, e2f_mm, (((1,), (0,)), ((), ())),
                               preferred_element_type=jnp.float32)    # (tm, dp)
        g_an = lax.dot_general(oh_an, e2f_mm, (((1,), (0,)), ((), ())),
                               preferred_element_type=jnp.float32)

        def row_dist(g):
            sq_g = jnp.sum(g * g, axis=1, keepdims=True)
            rdot = jnp.sum(e2b_f * g, axis=1, keepdims=True)
            return jnp.sqrt(jnp.maximum(sq2_blk + sq_g - 2.0 * rdot, 1e-12))

        ap_ref_d = row_dist(g_ap)
        an_ref_d = row_dist(g_an)
        m2 = jnp.maximum(ap_ref_d, an_ref_d)
        ea = jnp.exp(ap_ref_d - m2)
        eb = jnp.exp(an_ref_d - m2)
        inv = pl.reciprocal(ea + eb, approx=True)      # EUP slot, otherwise idle
        loss_row = -((ea * inv) * lp_p + (eb * inv) * lp_n)

    # Mask rows of a ragged last block, emit this block's partial sum (lane-dense tile).
    row_ids = lax.broadcasted_iota(jnp.int32, (tm, 1), 0) + pl.program_id(0) * tm
    loss_row = jnp.where(row_ids < n, loss_row, 0.0)
    block_sum = jnp.sum(loss_row, keepdims=True)                      # (1, 1)
    o_ref[...] = jnp.broadcast_to(block_sum, (8, _LANE))


def soft_triplet_loss(emb1, emb2, label, *, margin=None, normalize_feature=False,
                      mid_hard=False, block_rows=128):
    """Pallas TPU implementation of SoftTripletLoss.forward. Returns a scalar f32."""
    n, d = emb1.shape
    assert emb2.shape == (n, d) and label.shape == (n,)

    # Pad the feature dim to a lane multiple (zero columns change neither norms nor dists).
    dp = ((d + _LANE - 1) // _LANE) * _LANE
    if dp != d:
        emb1 = jnp.pad(emb1, ((0, 0), (0, dp - d)))
        if margin is None:
            emb2 = jnp.pad(emb2, ((0, 0), (0, dp - d)))

    lab_col = label.astype(jnp.int32).reshape(n, 1)
    lab_row = label.astype(jnp.int32).reshape(1, n)

    tm = n if n <= 256 else block_rows           # block_rows must be a multiple of 8
    num_blocks = -(-n // tm)

    blk = lambda i: (i, 0)
    full = lambda i: (0, 0)
    in_specs = [
        pl.BlockSpec((tm, 1), blk),       # labels, this row block
        pl.BlockSpec((1, n), full),       # labels, all columns
        pl.BlockSpec((tm, dp), blk),      # emb1 rows of this block
        pl.BlockSpec((n, dp), full),      # emb1, all rows (columns of dist1)
    ]
    args = [lab_col, lab_row, emb1, emb1]
    if margin is None:                    # emb2 only DMA'd when actually used
        in_specs += [pl.BlockSpec((tm, dp), blk), pl.BlockSpec((n, dp), full)]
        args += [emb2, emb2]

    itemsize = jnp.dtype(emb1.dtype).itemsize
    n_emb = 1 if margin is not None else 2
    flops = 2 * n * n * dp * (1 if margin is not None else 3) + 12 * n * n
    cost = pl.CostEstimate(
        flops=int(flops),
        transcendentals=int(8 * n + 2 * n),
        bytes_accessed=int(2 * n_emb * n * dp * itemsize + 8 * n
                           + num_blocks * 8 * _LANE * 4))

    est_vmem = (2 * n_emb * (n + tm) * dp * itemsize   # double-buffered emb tiles
                + 12 * tm * n * 4                      # (tm, n) f32 / i32 temporaries
                + 16 * (n + tm) * 4)
    vmem_limit = int(min(max(2 * est_vmem, 32 * 1024 * 1024), 56 * 1024 * 1024))

    kernel = functools.partial(_soft_triplet_kernel, margin=margin,
                               normalize_feature=normalize_feature, mid_hard=mid_hard)

    partials = pl.pallas_call(
        kernel,
        out_shape=jax.ShapeDtypeStruct((num_blocks * 8, _LANE), jnp.float32),
        grid=(num_blocks,),
        in_specs=in_specs,
        out_specs=pl.BlockSpec((8, _LANE), blk),
        compiler_params=pltpu.CompilerParams(
            dimension_semantics=("parallel",),
            vmem_limit_bytes=vmem_limit),
        cost_estimate=cost,
    )(*args)

    per_block = partials.reshape(num_blocks, 8, _LANE)[:, 0, 0]
    return jnp.sum(per_block) / n


# ----------------------------- pure-JAX reference -----------------------------
def _ref_loss(e1, e2, lab, margin=None, normalize_feature=False, mid_hard=False):
    e1 = e1.astype(jnp.float32)
    e2 = e2.astype(jnp.float32)
    if normalize_feature:
        e1 = e1 / jnp.maximum(jnp.linalg.norm(e1, axis=1, keepdims=True), 1e-12)
        e2 = e2 / jnp.maximum(jnp.linalg.norm(e2, axis=1, keepdims=True), 1e-12)

    def edist(x):
        sq = jnp.sum(x * x, axis=1, keepdims=True)
        d2 = sq + sq.T - 2.0 * (x @ x.T)
        return jnp.sqrt(jnp.clip(d2, 1e-12))

    n = e1.shape[0]
    dist = edist(e1)
    sim = (lab[:, None] == lab[None, :]).astype(jnp.float32)
    mp = dist - _BIG * (1.0 - sim)
    mn = dist + _BIG * sim
    if mid_hard:
        order = jnp.argsort(-mp, axis=1)
        ap_idx = order[:, 1]
        hard_p = jnp.take_along_axis(mp, ap_idx[:, None], axis=1)[:, 0]
    else:
        ap_idx = jnp.argmax(mp, axis=1)
        hard_p = jnp.max(mp, axis=1)
    an_idx = jnp.argmin(mn, axis=1)
    hard_n = jnp.min(mn, axis=1)
    logp = jax.nn.log_softmax(jnp.stack([hard_p, hard_n], axis=1), axis=1)
    if margin is not None:
        return jnp.mean(-margin * logp[:, 0] - (1.0 - margin) * logp[:, 1])
    dist2 = edist(e2)
    ap_ref = dist2[jnp.arange(n), ap_idx]
    an_ref = dist2[jnp.arange(n), an_idx]
    ref = jax.nn.softmax(jnp.stack([ap_ref, an_ref], axis=1), axis=1)
    return (-ref * logp).mean(0).sum()


if __name__ == "__main__":
    key = jax.random.PRNGKey(0)
    k1, k2 = jax.random.split(key)
    N, D = 8, 32
    emb1 = jax.random.normal(k1, (N, D), dtype=jnp.float32)
    emb2 = jax.random.normal(k2, (N, D), dtype=jnp.float32)
    label = jnp.array([0, 0, 1, 1, 2, 2, 3, 3], dtype=jnp.int32)
    label4 = jnp.array([0, 0, 0, 0, 1, 1, 1, 1], dtype=jnp.int32)  # >=2 positives for mid_hard

    configs = [
        dict(margin=None, normalize_feature=False, mid_hard=False, label=label),
        dict(margin=None, normalize_feature=True, mid_hard=False, label=label),
        dict(margin=0.3, normalize_feature=False, mid_hard=False, label=label),
        dict(margin=0.3, normalize_feature=False, mid_hard=True, label=label4),
        dict(margin=None, normalize_feature=False, mid_hard=True, label=label4),
    ]
    for cfg in configs:
        lab = cfg.pop("label")
        got = jax.block_until_ready(soft_triplet_loss(emb1, emb2, lab, **cfg))
        want = jax.block_until_ready(_ref_loss(emb1, emb2, lab, **cfg))
        np.testing.assert_allclose(np.asarray(got), np.asarray(want),
                                   rtol=1e-3, atol=1e-3)

    print("KERNEL_OK")
</pallas_src>

<mosaic_0001>
module attributes {stable_mosaic.version = 11 : i64} {
  func.func @_soft_triplet_kernel(%arg0: i32, %arg1: memref<8x1xi32, #tpu.memory_space<vmem>>, %arg2: memref<1x8xi32, #tpu.memory_space<vmem>>, %arg3: memref<8x128xf32, #tpu.memory_space<vmem>>, %arg4: memref<8x128xf32, #tpu.memory_space<vmem>>, %arg5: memref<8x128xf32, #tpu.memory_space<vmem>>, %arg6: memref<8x128xf32, #tpu.memory_space<vmem>>, %arg7: memref<8x128xf32, #tpu.memory_space<vmem>>) attributes {dimension_semantics = [#tpu.dimension_semantics<parallel>], iteration_bounds = array<i64: 1>, scalar_prefetch = 0 : i64, scratch_operands = 0 : i64, tpu.core_type = #tpu.core_type<tc>, window_params = [{transform_indices = @transform_0, window_bounds = array<i64: 8, 1>}, {pipeline_mode = #tpu.pipeline_mode<synchronous>, transform_indices = @transform_1, window_bounds = array<i64: 1, 8>}, {transform_indices = @transform_2, window_bounds = array<i64: 8, 128>}, {pipeline_mode = #tpu.pipeline_mode<synchronous>, transform_indices = @transform_3, window_bounds = array<i64: 8, 128>}, {transform_indices = @transform_4, window_bounds = array<i64: 8, 128>}, {pipeline_mode = #tpu.pipeline_mode<synchronous>, transform_indices = @transform_5, window_bounds = array<i64: 8, 128>}, {transform_indices = @transform_6, window_bounds = array<i64: 8, 128>}]} {
    %c0 = arith.constant 0 : index
    %c0_0 = arith.constant 0 : index
    %0 = vector.load %arg3[%c0, %c0_0] : memref<8x128xf32, #tpu.memory_space<vmem>>, vector<8x128xf32>
    %1 = arith.mulf %0, %0 : vector<8x128xf32>
    %cst = arith.constant dense<0.000000e+00> : vector<8xf32>
    %2 = vector.multi_reduction <add>, %1, %cst [1] : vector<8x128xf32> to vector<8xf32>
    %3 = vector.shape_cast %2 : vector<8xf32> to vector<8x1xf32>
    %c0_1 = arith.constant 0 : index
    %c0_2 = arith.constant 0 : index
    %4 = vector.load %arg4[%c0_1, %c0_2] : memref<8x128xf32, #tpu.memory_space<vmem>>, vector<8x128xf32>
    %c0_3 = arith.constant 0 : index
    %c0_4 = arith.constant 0 : index
    %5 = vector.load %arg1[%c0_3, %c0_4] : memref<8x1xi32, #tpu.memory_space<vmem>>, vector<8x1xi32>
    %c0_5 = arith.constant 0 : index
    %c0_6 = arith.constant 0 : index
    %6 = vector.load %arg2[%c0_5, %c0_6] : memref<1x8xi32, #tpu.memory_space<vmem>>, vector<1x8xi32>
    %7 = vector.broadcast %5 : vector<8x1xi32> to vector<8x8xi32>
    %8 = vector.broadcast %6 : vector<1x8xi32> to vector<8x8xi32>
    %9 = arith.cmpi eq, %7, %8 : vector<8x8xi32>
    %10 = arith.mulf %4, %4 : vector<8x128xf32>
    %cst_7 = arith.constant 1.000000e+00 : f32
    %11 = vector.broadcast %cst_7 : f32 to vector<1x128xf32>
    %cst_8 = arith.constant dense<0.000000e+00> : vector<1x8xf32>
    %12 = tpu.matmul %11, %10, %cst_8 {dimension_numbers = #tpu.dot_dimension_numbers<[1], [1], [0], [0], [0, 0, 1, 0], [], []>} : vector<1x128xf32>, vector<8x128xf32>, vector<1x8xf32> -> vector<1x8xf32>
    %cst_9 = arith.constant dense<0.000000e+00> : vector<8x8xf32>
    %13 = tpu.matmul %0, %4, %cst_9 {dimension_numbers = #tpu.dot_dimension_numbers<[1], [1], [0], [0], [0, 0, 1, 0], [], []>} : vector<8x128xf32>, vector<8x128xf32>, vector<8x8xf32> -> vector<8x8xf32>
    %14 = vector.broadcast %3 : vector<8x1xf32> to vector<8x8xf32>
    %15 = vector.broadcast %12 : vector<1x8xf32> to vector<8x8xf32>
    %16 = arith.addf %14, %15 : vector<8x8xf32>
    %cst_10 = arith.constant 2.000000e+00 : f32
    %17 = vector.broadcast %cst_10 : f32 to vector<8x8xf32>
    %18 = arith.mulf %17, %13 : vector<8x8xf32>
    %19 = arith.subf %16, %18 : vector<8x8xf32>
    %cst_11 = arith.constant 9.99999996E-13 : f32
    %20 = vector.broadcast %cst_11 : f32 to vector<8x8xf32>
    %21 = arith.maximumf %19, %20 : vector<8x8xf32>
    %22 = math.sqrt %21 : vector<8x8xf32>
    %cst_12 = arith.constant 0x4B18967F : f32
    %23 = vector.broadcast %cst_12 : f32 to vector<8x8xf32>
    %24 = arith.subf %22, %23 : vector<8x8xf32>
    %25 = arith.select %9, %22, %24 : vector<8x8xi1>, vector<8x8xf32>
    %cst_13 = arith.constant 0x4B18967F : f32
    %26 = vector.broadcast %cst_13 : f32 to vector<8x8xf32>
    %27 = arith.addf %22, %26 : vector<8x8xf32>
    %28 = arith.select %9, %27, %22 : vector<8x8xi1>, vector<8x8xf32>
    %29 = tpu.iota {dimensions = array<i32: 1>} : vector<8x8xi32>
    %cst_14 = arith.constant dense<0xFF800000> : vector<8xf32>
    %30 = vector.multi_reduction <maximumf>, %25, %cst_14 [1] : vector<8x8xf32> to vector<8xf32>
    %31 = vector.shape_cast %30 : vector<8xf32> to vector<8x1xf32>
    %32 = vector.broadcast %31 : vector<8x1xf32> to vector<8x8xf32>
    %33 = arith.cmpf oge, %25, %32 : vector<8x8xf32>
    %c8_i32 = arith.constant 8 : i32
    %34 = vector.broadcast %c8_i32 : i32 to vector<8x8xi32>
    %35 = arith.select %33, %29, %34 : vector<8x8xi1>, vector<8x8xi32>
    %cst_15 = arith.constant dense<2147483647> : vector<8xi32>
    %36 = vector.multi_reduction <minsi>, %35, %cst_15 [1] : vector<8x8xi32> to vector<8xi32>
    %37 = vector.shape_cast %36 : vector<8xi32> to vector<8x1xi32>
    %cst_16 = arith.constant dense<0x7F800000> : vector<8xf32>
    %38 = vector.multi_reduction <minimumf>, %28, %cst_16 [1] : vector<8x8xf32> to vector<8xf32>
    %39 = vector.shape_cast %38 : vector<8xf32> to vector<8x1xf32>
    %40 = arith.maximumf %31, %39 : vector<8x1xf32>
    %41 = arith.subf %31, %40 : vector<8x1xf32>
    %42 = math.exp %41 : vector<8x1xf32>
    %43 = arith.subf %39, %40 : vector<8x1xf32>
    %44 = math.exp %43 : vector<8x1xf32>
    %45 = arith.addf %42, %44 : vector<8x1xf32>
    %46 = math.log %45 : vector<8x1xf32>
    %47 = arith.addf %40, %46 : vector<8x1xf32>
    %48 = arith.subf %31, %47 : vector<8x1xf32>
    %49 = arith.subf %39, %47 : vector<8x1xf32>
    %50 = vector.broadcast %39 : vector<8x1xf32> to vector<8x8xf32>
    %51 = arith.cmpf ole, %28, %50 : vector<8x8xf32>
    %c8_i32_17 = arith.constant 8 : i32
    %52 = vector.broadcast %c8_i32_17 : i32 to vector<8x8xi32>
    %53 = arith.select %51, %29, %52 : vector<8x8xi1>, vector<8x8xi32>
    %cst_18 = arith.constant dense<2147483647> : vector<8xi32>
    %54 = vector.multi_reduction <minsi>, %53, %cst_18 [1] : vector<8x8xi32> to vector<8xi32>
    %55 = vector.shape_cast %54 : vector<8xi32> to vector<8x1xi32>
    %c0_19 = arith.constant 0 : index
    %c0_20 = arith.constant 0 : index
    %56 = vector.load %arg5[%c0_19, %c0_20] : memref<8x128xf32, #tpu.memory_space<vmem>>, vector<8x128xf32>
    %57 = arith.mulf %56, %56 : vector<8x128xf32>
    %cst_21 = arith.constant dense<0.000000e+00> : vector<8xf32>
    %58 = vector.multi_reduction <add>, %57, %cst_21 [1] : vector<8x128xf32> to vector<8xf32>
    %59 = vector.shape_cast %58 : vector<8xf32> to vector<8x1xf32>
    %c0_22 = arith.constant 0 : index
    %c0_23 = arith.constant 0 : index
    %60 = vector.load %arg6[%c0_22, %c0_23] : memref<8x128xf32, #tpu.memory_space<vmem>>, vector<8x128xf32>
    %61 = vector.broadcast %37 : vector<8x1xi32> to vector<8x8xi32>
    %62 = arith.cmpi eq, %29, %61 : vector<8x8xi32>
    %63 = arith.extui %62 : vector<8x8xi1> to vector<8x8xi32>
    %64 = arith.sitofp %63 : vector<8x8xi32> to vector<8x8xf32>
    %65 = vector.broadcast %55 : vector<8x1xi32> to vector<8x8xi32>
    %66 = arith.cmpi eq, %29, %65 : vector<8x8xi32>
    %67 = arith.extui %66 : vector<8x8xi1> to vector<8x8xi32>
    %68 = arith.sitofp %67 : vector<8x8xi32> to vector<8x8xf32>
    %cst_24 = arith.constant dense<0.000000e+00> : vector<8x128xf32>
    %69 = tpu.matmul %64, %60, %cst_24 {dimension_numbers = #tpu.dot_dimension_numbers<[1], [0], [0], [1], [0, 0, 1, 1], [], []>} : vector<8x8xf32>, vector<8x128xf32>, vector<8x128xf32> -> vector<8x128xf32>
    %cst_25 = arith.constant dense<0.000000e+00> : vector<8x128xf32>
    %70 = tpu.matmul %68, %60, %cst_25 {dimension_numbers = #tpu.dot_dimension_numbers<[1], [0], [0], [1], [0, 0, 1, 1], [], []>} : vector<8x8xf32>, vector<8x128xf32>, vector<8x128xf32> -> vector<8x128xf32>
    %71 = arith.mulf %69, %69 : vector<8x128xf32>
    %cst_26 = arith.constant dense<0.000000e+00> : vector<8xf32>
    %72 = vector.multi_reduction <add>, %71, %cst_26 [1] : vector<8x128xf32> to vector<8xf32>
    %73 = vector.shape_cast %72 : vector<8xf32> to vector<8x1xf32>
    %74 = arith.mulf %56, %69 : vector<8x128xf32>
    %cst_27 = arith.constant dense<0.000000e+00> : vector<8xf32>
    %75 = vector.multi_reduction <add>, %74, %cst_27 [1] : vector<8x128xf32> to vector<8xf32>
    %76 = vector.shape_cast %75 : vector<8xf32> to vector<8x1xf32>
    %77 = arith.addf %59, %73 : vector<8x1xf32>
    %cst_28 = arith.constant 2.000000e+00 : f32
    %78 = vector.broadcast %cst_28 : f32 to vector<8x1xf32>
    %79 = arith.mulf %78, %76 : vector<8x1xf32>
    %80 = arith.subf %77, %79 : vector<8x1xf32>
    %cst_29 = arith.constant 9.99999996E-13 : f32
    %81 = vector.broadcast %cst_29 : f32 to vector<8x1xf32>
    %82 = arith.maximumf %80, %81 : vector<8x1xf32>
    %83 = math.sqrt %82 : vector<8x1xf32>
    %84 = arith.mulf %70, %70 : vector<8x128xf32>
    %cst_30 = arith.constant dense<0.000000e+00> : vector<8xf32>
    %85 = vector.multi_reduction <add>, %84, %cst_30 [1] : vector<8x128xf32> to vector<8xf32>
    %86 = vector.shape_cast %85 : vector<8xf32> to vector<8x1xf32>
    %87 = arith.mulf %56, %70 : vector<8x128xf32>
    %cst_31 = arith.constant dense<0.000000e+00> : vector<8xf32>
    %88 = vector.multi_reduction <add>, %87, %cst_31 [1] : vector<8x128xf32> to vector<8xf32>
    %89 = vector.shape_cast %88 : vector<8xf32> to vector<8x1xf32>
    %90 = arith.addf %59, %86 : vector<8x1xf32>
    %cst_32 = arith.constant 2.000000e+00 : f32
    %91 = vector.broadcast %cst_32 : f32 to vector<8x1xf32>
    %92 = arith.mulf %91, %89 : vector<8x1xf32>
    %93 = arith.subf %90, %92 : vector<8x1xf32>
    %cst_33 = arith.constant 9.99999996E-13 : f32
    %94 = vector.broadcast %cst_33 : f32 to vector<8x1xf32>
    %95 = arith.maximumf %93, %94 : vector<8x1xf32>
    %96 = math.sqrt %95 : vector<8x1xf32>
    %97 = arith.maximumf %83, %96 : vector<8x1xf32>
    %98 = arith.subf %83, %97 : vector<8x1xf32>
    %99 = math.exp %98 : vector<8x1xf32>
    %100 = arith.subf %96, %97 : vector<8x1xf32>
    %101 = math.exp %100 : vector<8x1xf32>
    %102 = arith.addf %99, %101 : vector<8x1xf32>
    %103 = tpu.reciprocal %102 {approx = true} : vector<8x1xf32> -> vector<8x1xf32>
    %104 = arith.mulf %99, %103 : vector<8x1xf32>
    %105 = arith.mulf %104, %48 : vector<8x1xf32>
    %106 = arith.mulf %101, %103 : vector<8x1xf32>
    %107 = arith.mulf %106, %49 : vector<8x1xf32>
    %108 = arith.addf %105, %107 : vector<8x1xf32>
    %cst_34 = arith.constant 0.000000e+00 : f32
    %109 = vector.broadcast %cst_34 : f32 to vector<8x1xf32>
    %110 = arith.subf %109, %108 : vector<8x1xf32>
    %111 = tpu.iota {dimensions = array<i32: 0>} : vector<8x1xi32>
    %c8_i32_35 = arith.constant 8 : i32
    %112 = arith.muli %arg0, %c8_i32_35 : i32
    %113 = vector.broadcast %112 : i32 to vector<8x1xi32>
    %114 = arith.addi %111, %113 : vector<8x1xi32>
    %c8_i32_36 = arith.constant 8 : i32
    %115 = vector.broadcast %c8_i32_36 : i32 to vector<8x1xi32>
    %116 = arith.cmpi slt, %114, %115 : vector<8x1xi32>
    %cst_37 = arith.constant 0.000000e+00 : f32
    %117 = vector.broadcast %cst_37 : f32 to vector<8x1xf32>
    %118 = arith.select %116, %110, %117 : vector<8x1xi1>, vector<8x1xf32>
    %119 = vector.shape_cast %118 : vector<8x1xf32> to vector<1x8x1xf32>
    %cst_38 = arith.constant dense<0.000000e+00> : vector<1xf32>
    %120 = vector.multi_reduction <add>, %119, %cst_38 [1, 2] : vector<1x8x1xf32> to vector<1xf32>
    %121 = vector.shape_cast %120 : vector<1xf32> to vector<1x1x1xf32>
    %122 = vector.extract %121[0, 0, 0] : f32 from vector<1x1x1xf32>
    %123 = vector.broadcast %122 : f32 to vector<1x1xf32>
    %124 = vector.shape_cast %123 : vector<1x1xf32> to vector<1x1xf32>
    %125 = vector.broadcast %124 : vector<1x1xf32> to vector<8x128xf32>
    %c0_39 = arith.constant 0 : index
    %c0_40 = arith.constant 0 : index
    %126 = vector.load %arg7[%c0_39, %c0_40] : memref<8x128xf32, #tpu.memory_space<vmem>>, vector<8x128xf32>
    tpu.vector_store %arg7[%c0_39, %c0_40], %125 {strides = array<i32>} : memref<8x128xf32, #tpu.memory_space<vmem>>, vector<8x128xf32>,
    return
  }
  func.func @transform_0(%arg0: i32) -> (i32, i32) {
    %c0_i32 = arith.constant 0 : i32
    %c0_i32_0 = arith.constant 0 : i32
    return %arg0, %c0_i32 : i32, i32
  }
  func.func @transform_1(%arg0: i32) -> (i32, i32) {
    %c0_i32 = arith.constant 0 : i32
    %c0_i32_0 = arith.constant 0 : i32
    %c0_i32_1 = arith.constant 0 : i32
    return %c0_i32, %c0_i32_0 : i32, i32
  }
  func.func @transform_2(%arg0: i32) -> (i32, i32) {
    %c0_i32 = arith.constant 0 : i32
    %c0_i32_0 = arith.constant 0 : i32
    return %arg0, %c0_i32 : i32, i32
  }
  func.func @transform_3(%arg0: i32) -> (i32, i32) {
    %c0_i32 = arith.constant 0 : i32
    %c0_i32_0 = arith.constant 0 : i32
    %c0_i32_1 = arith.constant 0 : i32
    return %c0_i32, %c0_i32_0 : i32, i32
  }
  func.func @transform_4(%arg0: i32) -> (i32, i32) {
    %c0_i32 = arith.constant 0 : i32
    %c0_i32_0 = arith.constant 0 : i32
    return %arg0, %c0_i32 : i32, i32
  }
  func.func @transform_5(%arg0: i32) -> (i32, i32) {
    %c0_i32 = arith.constant 0 : i32
    %c0_i32_0 = arith.constant 0 : i32
    %c0_i32_1 = arith.constant 0 : i32
    return %c0_i32, %c0_i32_0 : i32, i32
  }
  func.func @transform_6(%arg0: i32) -> (i32, i32) {
    %c0_i32 = arith.constant 0 : i32
    %c0_i32_0 = arith.constant 0 : i32
    return %arg0, %c0_i32 : i32, i32
  }
}

</mosaic_0001>

<llo_original>
// kernel: tpu_custom_call.1
$region0: #{tpu_custom_call.1}
  #allocation0 [shape = 'u32[]', space=smem, size = 0x4, offset = 0x4, fixed_abs, tag = 'smem constant byte address 0x4 - core index']
  #allocation1 [shape = 'u32[144,128]{1,0:T(1,128)}', space=vmem, size = 0x12000, scoped, tag = 'internal scratch']
  %s0 = inlined_call_operand.vmem [shape: s32[8,1], index: 0, kind: input, shape index: {}]
  %s1 = inlined_call_operand.hbm [shape: s32[1,8], index: 1, kind: input, shape index: {}]
  %s2 = inlined_call_operand.vmem [shape: f32[8,128], index: 2, kind: input, shape index: {}]
  %s3 = inlined_call_operand.vmem [shape: f32[8,128], index: 3, kind: input, shape index: {}]
  %s4 = inlined_call_operand.vmem [shape: f32[8,128], index: 4, kind: input, shape index: {}]
  %s5 = inlined_call_operand.hbm [shape: f32[8,128], index: 5, kind: input, shape index: {}]
  %s6 = inlined_call_operand.hbm [shape: f32[8,128], index: 6, kind: output, shape index: {}]
  %s7 = sld [smem:[#allocation0]]
  $region42: #{tpu_custom_call.1} parent=0
    _
  %s9 = ssub.s32 1, %s7
  %s10 = scalar_select 0, %s9, %s7
  $region1: #{tpu_custom_call.1} parent=0
    #allocation2 [shape = 'u8[512]{0}', space=vmem, size = 0x400, scoped, tag = 'input window, operand 1, single buffered']
    #allocation3 [shape = 's32[1]{0}', space=sflag, size = 0x4, scoped, tag = 'scoped memory for tpu_custom_call.1']
    #allocation4 [shape = 's32[1]{0}', space=sflag, size = 0x4, scoped, tag = 'scoped memory for tpu_custom_call.1']
    #allocation5 [shape = 'u8[4096]{0}', space=vmem, size = 0x1000, scoped, tag = 'input window, operand 5, single buffered']
    #allocation6 [shape = 's32[1]{0}', space=sflag, size = 0x4, scoped, tag = 'scoped memory for tpu_custom_call.1']
    #allocation7 [shape = 'u8[4096]{0}', space=vmem, size = 0x1000, scoped, tag = 'output window, operand 0, single buffered']
    %11 = vsyncpa [#allocation3], 0
    %12 = vsyncpa [#allocation6], 0
    %13 = vsyncpa [#allocation4], 0
    // Predicated region
    $region2: #{tpu_custom_call.1} parent=1 // pred_check
      _
    $region3: #{tpu_custom_call.1} parent=1 // pred_check_branch
      %15 = sbr.rel (0) target = $region5
    $region4: #{tpu_custom_call.1} parent=1 // pred_region
      _
    $region5: #{tpu_custom_call.1} parent=1 // pred_fallthru
      _
    // Predicated region
    $region6: #{tpu_custom_call.1} parent=1 // pred_check
      _
    $region7: #{tpu_custom_call.1} parent=1 // pred_check_branch
      %17 = sbr.rel (0) target = $region9
    $region8: #{tpu_custom_call.1} parent=1 // pred_region
      %s19 = ssub.s32 16, 16
      %20 = vsyncadd [#allocation3], %s19
      %s22 = sshll.u32 [#allocation2], 4
      %s23 = int_to_ptr.vmem [resolvable:$true] %s22
      %25 = dma.hbm_to_vmem [thread:$0]  %s1, 16, %s23, [#allocation3]
    $region9: #{tpu_custom_call.1} parent=1 // pred_fallthru
      _
    // Predicated region
    $region10: #{tpu_custom_call.1} parent=1 // pred_check
      _
    $region11: #{tpu_custom_call.1} parent=1 // pred_check_branch
      %27 = sbr.rel (0) target = $region13
    $region12: #{tpu_custom_call.1} parent=1 // pred_region
      _
    $region13: #{tpu_custom_call.1} parent=1 // pred_fallthru
      _
    // Predicated region
    $region14: #{tpu_custom_call.1} parent=1 // pred_check
      _
    $region15: #{tpu_custom_call.1} parent=1 // pred_check_branch
      %29 = sbr.rel (0) target = $region17
    $region16: #{tpu_custom_call.1} parent=1 // pred_region
      _
    $region17: #{tpu_custom_call.1} parent=1 // pred_fallthru
      _
    // Predicated region
    $region18: #{tpu_custom_call.1} parent=1 // pred_check
      _
    $region19: #{tpu_custom_call.1} parent=1 // pred_check_branch
      %31 = sbr.rel (0) target = $region21
    $region20: #{tpu_custom_call.1} parent=1 // pred_region
      _
    $region21: #{tpu_custom_call.1} parent=1 // pred_fallthru
      _
    // Predicated region
    $region22: #{tpu_custom_call.1} parent=1 // pred_check
      _
    $region23: #{tpu_custom_call.1} parent=1 // pred_check_branch
      %33 = sbr.rel (0) target = $region25
    $region24: #{tpu_custom_call.1} parent=1 // pred_region
      %s35 = ssub.s32 128, 128
      %36 = vsyncadd [#allocation6], %s35
      %s38 = sshll.u32 [#allocation5], 4
      %s39 = int_to_ptr.vmem [resolvable:$true] %s38
      %41 = dma.hbm_to_vmem [thread:$0]  %s5, 128, %s39, [#allocation6]
    $region25: #{tpu_custom_call.1} parent=1 // pred_fallthru
      _
    // Predicated region
    $region26: #{tpu_custom_call.1} parent=1 // pred_check
      _
    $region27: #{tpu_custom_call.1} parent=1 // pred_check_branch
      %43 = sbr.rel (0) target = $region29
    $region28: #{tpu_custom_call.1} parent=1 // pred_region
      %44 = dma.done [#allocation3], 16
    $region29: #{tpu_custom_call.1} parent=1 // pred_fallthru
      _
    // Predicated region
    $region30: #{tpu_custom_call.1} parent=1 // pred_check
      _
    $region31: #{tpu_custom_call.1} parent=1 // pred_check_branch
      %46 = sbr.rel (0) target = $region33
    $region32: #{tpu_custom_call.1} parent=1 // pred_region
      %47 = dma.done [#allocation6], 128
    $region33: #{tpu_custom_call.1} parent=1 // pred_fallthru
      _
    %v48 = vld [vmem:[%s2] sm:$0xff]
    %v49 = vmul.f32 %v48, %v48
    %50 = vadd.xlane.f32.xlu0 %v49
    %v51 = vpop.xlane.xlu0 %50
    %v52 = vld [vmem:[%s3] sm:$0xff]
    %v53 = vld [vmem:[%s0] sm:$0xff]
    %v54 = vld [vmem:[#allocation2] sm:$0x1]
    %55 = vset.pattern.permute.xlu0 0
    %56 = vperm.xlu0 %55, %v53
    %v57 = vpop.permute.xlu0 %56
    %v58 = vlaneseq
    %v59 = vshrl.u32 %v58, 7
    %v60 = vsub.s32 0, %v59
    %v61 = vrot.slane %v54, %v60
    %vm62 = vcmp.eq.s32.totalorder %v57, %v61
    %v63 = vmul.f32 %v52, %v52
    %64 = vmatprep.subr.mxu0 0.0
    %65 = vmatpush1.xpose.msra.mxu0 %v63
    %66 = vmatprep.subr.mxu0 0.0
    %67 = vmatpush1.xpose.msra.mxu0 0.0
    %68 = vmatprep.subr.mxu0 0.0
    %69 = vmatpush1.xpose.msra.mxu0 0.0
    %70 = vmatprep.subr.mxu0 0.0
    %71 = vmatpush1.xpose.msra.mxu0 0.0
    %72 = vmatprep.subr.mxu0 0.0
    %73 = vmatpush1.xpose.msra.mxu0 0.0
    %74 = vmatprep.subr.mxu0 0.0
    %75 = vmatpush1.xpose.msra.mxu0 0.0
    %76 = vmatprep.subr.mxu0 0.0
    %77 = vmatpush1.xpose.msra.mxu0 0.0
    %78 = vmatprep.subr.mxu0 0.0
    %79 = vmatpush1.xpose.msra.mxu0 0.0
    %80 = vmatprep.subr.mxu0 0.0
    %81 = vmatpush1.xpose.msra.mxu0 0.0
    %82 = vmatprep.subr.mxu0 0.0
    %83 = vmatpush1.xpose.msra.mxu0 0.0
    %84 = vmatprep.subr.mxu0 0.0
    %85 = vmatpush1.xpose.msra.mxu0 0.0
    %86 = vmatprep.subr.mxu0 0.0
    %87 = vmatpush1.xpose.msra.mxu0 0.0
    %88 = vmatprep.subr.mxu0 0.0
    %89 = vmatpush1.xpose.msra.mxu0 0.0
    %90 = vmatprep.subr.mxu0 0.0
    %91 = vmatpush1.xpose.msra.mxu0 0.0
    %92 = vmatprep.subr.mxu0 0.0
    %93 = vmatpush1.xpose.msra.mxu0 0.0
    %94 = vmatprep.subr.mxu0 0.0
    %95 = vmatpush1.xpose.msra.mxu0 0.0
    %96 = vmatprep.subr.mxu0 0.0
    %97 = vmatpush1.xpose.msra.mxu0 0.0
    %98 = vmatprep.subr.mxu0 0.0
    %99 = vmatpush1.xpose.msra.mxu0 0.0
    %100 = vmatprep.subr.mxu0 0.0
    %101 = vmatpush1.xpose.msra.mxu0 0.0
    %102 = vmatprep.subr.mxu0 0.0
    %103 = vmatpush1.xpose.msra.mxu0 0.0
    %104 = vmatprep.subr.mxu0 0.0
    %105 = vmatpush1.xpose.msra.mxu0 0.0
    %106 = vmatprep.subr.mxu0 0.0
    %107 = vmatpush1.xpose.msra.mxu0 0.0
    %108 = vmatprep.subr.mxu0 0.0
    %109 = vmatpush1.xpose.msra.mxu0 0.0
    %110 = vmatprep.subr.mxu0 0.0
    %111 = vmatpush1.xpose.msra.mxu0 0.0
    %112 = vmatprep.subr.mxu0 0.0
    %113 = vmatpush1.xpose.msra.mxu0 0.0
    %114 = vmatprep.subr.mxu0 0.0
    %115 = vmatpush1.xpose.msra.mxu0 0.0
    %116 = vmatprep.subr.mxu0 0.0
    %117 = vmatpush1.xpose.msra.mxu0 0.0
    %118 = vmatprep.subr.mxu0 0.0
    %119 = vmatpush1.xpose.msra.mxu0 0.0
    %120 = vmatprep.subr.mxu0 0.0
    %121 = vmatpush1.xpose.msra.mxu0 0.0
    %122 = vmatprep.subr.mxu0 0.0
    %123 = vmatpush1.xpose.msra.mxu0 0.0
    %124 = vmatprep.subr.mxu0 0.0
    %125 = vmatpush1.xpose.msra.mxu0 0.0
    %126 = vmatprep.subr.mxu0 0.0
    %127 = vmatpush1.xpose.msra.mxu0 0.0
    %128 = vmatprep.mubr.f32.mxu0 0.0
    %129 = vmatmul.mubr.f32.gmra.mrb[0].mxu0 1.0
    %v130 = vpop.f32.mrb[0].mxu0
    %v131 = vadd.f32 0.0, %v130
    %v132 = vpop.f32.mrb[0].mxu0
    %133 = vdwg.mxu0
    %134 = vmatprep.subr.mxu0 0.0
    %135 = vmatpush1.xpose.msra.mxu0 %v52
    %136 = vmatprep.subr.mxu0 0.0
    %137 = vmatpush1.xpose.msra.mxu0 0.0
    %138 = vmatprep.subr.mxu0 0.0
    %139 = vmatpush1.xpose.msra.mxu0 0.0
    %140 = vmatprep.subr.mxu0 0.0
    %141 = vmatpush1.xpose.msra.mxu0 0.0
    %142 = vmatprep.subr.mxu0 0.0
    %143 = vmatpush1.xpose.msra.mxu0 0.0
    %144 = vmatprep.subr.mxu0 0.0
    %145 = vmatpush1.xpose.msra.mxu0 0.0
    %146 = vmatprep.subr.mxu0 0.0
    %147 = vmatpush1.xpose.msra.mxu0 0.0
    %148 = vmatprep.subr.mxu0 0.0
    %149 = vmatpush1.xpose.msra.mxu0 0.0
    %150 = vmatprep.subr.mxu0 0.0
    %151 = vmatpush1.xpose.msra.mxu0 0.0
    %152 = vmatprep.subr.mxu0 0.0
    %153 = vmatpush1.xpose.msra.mxu0 0.0
    %154 = vmatprep.subr.mxu0 0.0
    %155 = vmatpush1.xpose.msra.mxu0 0.0
    %156 = vmatprep.subr.mxu0 0.0
    %157 = vmatpush1.xpose.msra.mxu0 0.0
    %158 = vmatprep.subr.mxu0 0.0
    %159 = vmatpush1.xpose.msra.mxu0 0.0
    %160 = vmatprep.subr.mxu0 0.0
    %161 = vmatpush1.xpose.msra.mxu0 0.0
    %162 = vmatprep.subr.mxu0 0.0
    %163 = vmatpush1.xpose.msra.mxu0 0.0
    %164 = vmatprep.subr.mxu0 0.0
    %165 = vmatpush1.xpose.msra.mxu0 0.0
    %166 = vmatprep.subr.mxu0 0.0
    %167 = vmatpush1.xpose.msra.mxu0 0.0
    %168 = vmatprep.subr.mxu0 0.0
    %169 = vmatpush1.xpose.msra.mxu0 0.0
    %170 = vmatprep.subr.mxu0 0.0
    %171 = vmatpush1.xpose.msra.mxu0 0.0
    %172 = vmatprep.subr.mxu0 0.0
    %173 = vmatpush1.xpose.msra.mxu0 0.0
    %174 = vmatprep.subr.mxu0 0.0
    %175 = vmatpush1.xpose.msra.mxu0 0.0
    %176 = vmatprep.subr.mxu0 0.0
    %177 = vmatpush1.xpose.msra.mxu0 0.0
    %178 = vmatprep.subr.mxu0 0.0
    %179 = vmatpush1.xpose.msra.mxu0 0.0
    %180 = vmatprep.subr.mxu0 0.0
    %181 = vmatpush1.xpose.msra.mxu0 0.0
    %182 = vmatprep.subr.mxu0 0.0
    %183 = vmatpush1.xpose.msra.mxu0 0.0
    %184 = vmatprep.subr.mxu0 0.0
    %185 = vmatpush1.xpose.msra.mxu0 0.0
    %186 = vmatprep.subr.mxu0 0.0
    %187 = vmatpush1.xpose.msra.mxu0 0.0
    %188 = vmatprep.subr.mxu0 0.0
    %189 = vmatpush1.xpose.msra.mxu0 0.0
    %190 = vmatprep.subr.mxu0 0.0
    %191 = vmatpush1.xpose.msra.mxu0 0.0
    %192 = vmatprep.subr.mxu0 0.0
    %193 = vmatpush1.xpose.msra.mxu0 0.0
    %194 = vmatprep.subr.mxu0 0.0
    %195 = vmatpush1.xpose.msra.mxu0 0.0
    %196 = vmatprep.subr.mxu0 0.0
    %197 = vmatpush1.xpose.msra.mxu0 0.0
    %198 = vmatprep.mubr.f32.mxu0 0.0
    %199 = vmatmul.mubr.f32.gmra.mrb[0].mxu0 %v48
    %v200 = vpop.f32.mrb[0].mxu0
    %v201 = vadd.f32 0.0, %v200
    %v202 = vpop.f32.mrb[0].mxu0
    %203 = vdwg.mxu0
    %v204 = vlaneseq
    %v205 = vshrl.u32 %v204, 7
    %v206 = vsub.s32 0, %v205
    %v207 = vrot.slane %v131, %v206
    %v208 = vadd.f32 %v51, %v207
    %v209 = vmul.f32 %v201, 2.0
    %v210 = vsub.f32 %v208, %v209
    %v211 = vmax.f32 %v210, 1e-12
    %v212 = vrsqrt.pop %v211
    %v213 = vmul.f32 %v211, %v212
    %vm214 = vcmp.eq.f32.partialorder %v211, inf
    %v215 = vsel %vm214, %v211, %v213
    %vm216 = vcmp.eq.f32.partialorder %v211, 0.0
    %v217 = vand.u32 %v211, 2147483648
    %v218 = vsel %vm216, %v217, %v215
    %v219 = vsub.f32 %v218, 9999999.0
    %v220 = vsel %vm62, %v218, %v219
    %v221 = vadd.f32 %v218, 9999999.0
    %v222 = vsel %vm62, %v221, %v218
    %v223 = vlaneseq
    %v224 = vand.u32 %v223, 127
    %vm225 = vcmask 64512
    %v226 = vsel %vm225, %v220, -inf
    %227 = vmax.xlane.f32.xlu0 %v226
    %v228 = vpop.xlane.xlu0 %227
    %vm229 = vcmp.ge.f32.partialorder %v220, %v228
    %v230 = vsel %vm229, %v224, 8
    %v231 = vsel %vm225, %v230, 2147483647
    %v232 = vand.u32 %v231, 65535
    %v233 = vshra.s32 %v231, 16
    %v234 = vcvt.s32.f32 %v232
    %v235 = vcvt.s32.f32 %v233
    %236 = vmin.xlane.f32.xlu0 %v235
    %v237 = vpop.xlane.xlu0 %236
    %vm238 = vcmp.eq.f32.partialorder %v235, %v237
    %v239 = vsel %vm238, %v234, inf
    %240 = vmin.xlane.f32.xlu0 %v239
    %v241 = vpop.xlane.xlu0 %240
    %v242 = vcvt.f32.s32 %v241
    %v243 = vcvt.f32.s32 %v237
    %v244 = vshll.u32 %v243, 16
    %v245 = vadd.s32 %v244, %v242
    %v246 = vsel %vm225, %v222, inf
    %247 = vmin.xlane.f32.xlu0 %v246
    %v248 = vpop.xlane.xlu0 %247
    %v249 = vmax.f32 %v228, %v248
    %v250 = vsub.f32 %v228, %v249
    %v251 = vmul.f32 %v250, 1.442695
    %v252 = vpow.pop %v251
    %v253 = vsub.f32 %v248, %v249
    %v254 = vmul.f32 %v253, 1.442695
    %v255 = vpow.pop %v254
    %v256 = vadd.f32 %v252, %v255
    %v257 = vlog2.pop %v256
    %v258 = vmul.f32 %v257, 0.6931472
    %v259 = vadd.f32 %v249, %v258
    %v260 = vsub.f32 %v228, %v259
    %v261 = vsub.f32 %v248, %v259
    %vm262 = vcmp.le.f32.partialorder %v222, %v248
    %v263 = vsel %vm262, %v224, 8
    %v264 = vsel %vm225, %v263, 2147483647
    %v265 = vand.u32 %v264, 65535
    %v266 = vshra.s32 %v264, 16
    %v267 = vcvt.s32.f32 %v265
    %v268 = vcvt.s32.f32 %v266
    %269 = vmin.xlane.f32.xlu0 %v268
    %v270 = vpop.xlane.xlu0 %269
    %vm271 = vcmp.eq.f32.partialorder %v268, %v270
    %v272 = vsel %vm271, %v267, inf
    %273 = vmin.xlane.f32.xlu0 %v272
    %v274 = vpop.xlane.xlu0 %273
    %v275 = vcvt.f32.s32 %v274
    %v276 = vcvt.f32.s32 %v270
    %v277 = vshll.u32 %v276, 16
    %v278 = vadd.s32 %v277, %v275
    %v279 = vld [vmem:[%s4] sm:$0xff]
    %v280 = vmul.f32 %v279, %v279
    %281 = vadd.xlane.f32.xlu0 %v280
    %v282 = vpop.xlane.xlu0 %281
    %v283 = vld [vmem:[#allocation5] sm:$0xff]
    %vm284 = vcmp.eq.s32.totalorder %v224, %v245
    %v285 = vsel %vm284, 1, 0
    %v286 = vcvt.s32.f32 %v285
    %vm287 = vcmp.eq.s32.totalorder %v224, %v278
    %v288 = vsel %vm287, 1, 0
    %v289 = vcvt.s32.f32 %v288
    %v291 = vsel %vm225, %v286, 0
    %293 = vmatprep.subr.mxu0 0.0
    %294 = vmatpush1.msra.mxu0 %v283
    %295 = vmatprep.subr.mxu0 0.0
    %296 = vmatpush1.msra.mxu0 0.0
    %297 = vmatprep.subr.mxu0 0.0
    %298 = vmatpush1.msra.mxu0 0.0
    %299 = vmatprep.subr.mxu0 0.0
    %300 = vmatpush1.msra.mxu0 0.0
    %301 = vmatprep.subr.mxu0 0.0
    %302 = vmatpush1.msra.mxu0 0.0
    %303 = vmatprep.subr.mxu0 0.0
    %304 = vmatpush1.msra.mxu0 0.0
    %305 = vmatprep.subr.mxu0 0.0
    %306 = vmatpush1.msra.mxu0 0.0
    %307 = vmatprep.subr.mxu0 0.0
    %308 = vmatpush1.msra.mxu0 0.0
    %309 = vmatprep.subr.mxu0 0.0
    %310 = vmatpush1.msra.mxu0 0.0
    %311 = vmatprep.subr.mxu0 0.0
    %312 = vmatpush1.msra.mxu0 0.0
    %313 = vmatprep.subr.mxu0 0.0
    %314 = vmatpush1.msra.mxu0 0.0
    %315 = vmatprep.subr.mxu0 0.0
    %316 = vmatpush1.msra.mxu0 0.0
    %317 = vmatprep.subr.mxu0 0.0
    %318 = vmatpush1.msra.mxu0 0.0
    %319 = vmatprep.subr.mxu0 0.0
    %320 = vmatpush1.msra.mxu0 0.0
    %321 = vmatprep.subr.mxu0 0.0
    %322 = vmatpush1.msra.mxu0 0.0
    %323 = vmatprep.subr.mxu0 0.0
    %324 = vmatpush1.msra.mxu0 0.0
    %325 = vmatprep.subr.mxu0 0.0
    %326 = vmatpush1.msra.mxu0 0.0
    %327 = vmatprep.subr.mxu0 0.0
    %328 = vmatpush1.msra.mxu0 0.0
    %329 = vmatprep.subr.mxu0 0.0
    %330 = vmatpush1.msra.mxu0 0.0
    %331 = vmatprep.subr.mxu0 0.0
    %332 = vmatpush1.msra.mxu0 0.0
    %333 = vmatprep.subr.mxu0 0.0
    %334 = vmatpush1.msra.mxu0 0.0
    %335 = vmatprep.subr.mxu0 0.0
    %336 = vmatpush1.msra.mxu0 0.0
    %337 = vmatprep.subr.mxu0 0.0
    %338 = vmatpush1.msra.mxu0 0.0
    %339 = vmatprep.subr.mxu0 0.0
    %340 = vmatpush1.msra.mxu0 0.0
    %341 = vmatprep.subr.mxu0 0.0
    %342 = vmatpush1.msra.mxu0 0.0
    %343 = vmatprep.subr.mxu0 0.0
    %344 = vmatpush1.msra.mxu0 0.0
    %345 = vmatprep.subr.mxu0 0.0
    %346 = vmatpush1.msra.mxu0 0.0
    %347 = vmatprep.subr.mxu0 0.0
    %348 = vmatpush1.msra.mxu0 0.0
    %349 = vmatprep.subr.mxu0 0.0
    %350 = vmatpush1.msra.mxu0 0.0
    %351 = vmatprep.subr.mxu0 0.0
    %352 = vmatpush1.msra.mxu0 0.0
    %353 = vmatprep.subr.mxu0 0.0
    %354 = vmatpush1.msra.mxu0 0.0
    %355 = vmatprep.subr.mxu0 0.0
    %356 = vmatpush1.msra.mxu0 0.0
    %357 = vmatprep.mubr.f32.mxu0 0.0
    %358 = vmatmul.mubr.f32.gmra.mrb[0].mxu0 %v291
    %v359 = vpop.f32.mrb[0].mxu0
    %v360 = vadd.f32 0.0, %v359
    %v361 = vpop.f32.mrb[0].mxu0
    %362 = vdwg.mxu0
    %v364 = vsel %vm225, %v289, 0
    %366 = vmatprep.subr.mxu0 0.0
    %367 = vmatpush1.msra.mxu0 %v283
    %368 = vmatprep.subr.mxu0 0.0
    %369 = vmatpush1.msra.mxu0 0.0
    %370 = vmatprep.subr.mxu0 0.0
    %371 = vmatpush1.msra.mxu0 0.0
    %372 = vmatprep.subr.mxu0 0.0
    %373 = vmatpush1.msra.mxu0 0.0
    %374 = vmatprep.subr.mxu0 0.0
    %375 = vmatpush1.msra.mxu0 0.0
    %376 = vmatprep.subr.mxu0 0.0
    %377 = vmatpush1.msra.mxu0 0.0
    %378 = vmatprep.subr.mxu0 0.0
    %379 = vmatpush1.msra.mxu0 0.0
    %380 = vmatprep.subr.mxu0 0.0
    %381 = vmatpush1.msra.mxu0 0.0
    %382 = vmatprep.subr.mxu0 0.0
    %383 = vmatpush1.msra.mxu0 0.0
    %384 = vmatprep.subr.mxu0 0.0
    %385 = vmatpush1.msra.mxu0 0.0
    %386 = vmatprep.subr.mxu0 0.0
    %387 = vmatpush1.msra.mxu0 0.0
    %388 = vmatprep.subr.mxu0 0.0
    %389 = vmatpush1.msra.mxu0 0.0
    %390 = vmatprep.subr.mxu0 0.0
    %391 = vmatpush1.msra.mxu0 0.0
    %392 = vmatprep.subr.mxu0 0.0
    %393 = vmatpush1.msra.mxu0 0.0
    %394 = vmatprep.subr.mxu0 0.0
    %395 = vmatpush1.msra.mxu0 0.0
    %396 = vmatprep.subr.mxu0 0.0
    %397 = vmatpush1.msra.mxu0 0.0
    %398 = vmatprep.subr.mxu0 0.0
    %399 = vmatpush1.msra.mxu0 0.0
    %400 = vmatprep.subr.mxu0 0.0
    %401 = vmatpush1.msra.mxu0 0.0
    %402 = vmatprep.subr.mxu0 0.0
    %403 = vmatpush1.msra.mxu0 0.0
    %404 = vmatprep.subr.mxu0 0.0
    %405 = vmatpush1.msra.mxu0 0.0
    %406 = vmatprep.subr.mxu0 0.0
    %407 = vmatpush1.msra.mxu0 0.0
    %408 = vmatprep.subr.mxu0 0.0
    %409 = vmatpush1.msra.mxu0 0.0
    %410 = vmatprep.subr.mxu0 0.0
    %411 = vmatpush1.msra.mxu0 0.0
    %412 = vmatprep.subr.mxu0 0.0
    %413 = vmatpush1.msra.mxu0 0.0
    %414 = vmatprep.subr.mxu0 0.0
    %415 = vmatpush1.msra.mxu0 0.0
    %416 = vmatprep.subr.mxu0 0.0
    %417 = vmatpush1.msra.mxu0 0.0
    %418 = vmatprep.subr.mxu0 0.0
    %419 = vmatpush1.msra.mxu0 0.0
    %420 = vmatprep.subr.mxu0 0.0
    %421 = vmatpush1.msra.mxu0 0.0
    %422 = vmatprep.subr.mxu0 0.0
    %423 = vmatpush1.msra.mxu0 0.0
    %424 = vmatprep.subr.mxu0 0.0
    %425 = vmatpush1.msra.mxu0 0.0
    %426 = vmatprep.subr.mxu0 0.0
    %427 = vmatpush1.msra.mxu0 0.0
    %428 = vmatprep.subr.mxu0 0.0
    %429 = vmatpush1.msra.mxu0 0.0
    %430 = vmatprep.mubr.f32.mxu0 0.0
    %431 = vmatmul.mubr.f32.gmra.mrb[0].mxu0 %v364
    %v432 = vpop.f32.mrb[0].mxu0
    %v433 = vadd.f32 0.0, %v432
    %v434 = vpop.f32.mrb[0].mxu0
    %435 = vdwg.mxu0
    %v436 = vmul.f32 %v360, %v360
    %437 = vadd.xlane.f32.xlu0 %v436
    %v438 = vpop.xlane.xlu0 %437
    %v439 = vmul.f32 %v279, %v360
    %440 = vadd.xlane.f32.xlu0 %v439
    %v441 = vpop.xlane.xlu0 %440
    %v442 = vadd.f32 %v282, %v438
    %v443 = vmul.f32 %v441, 2.0
    %v444 = vsub.f32 %v442, %v443
    %v445 = vmax.f32 %v444, 1e-12
    %v446 = vrsqrt.pop %v445
    %v447 = vmul.f32 %v445, %v446
    %vm448 = vcmp.eq.f32.partialorder %v445, inf
    %v449 = vsel %vm448, %v445, %v447
    %vm450 = vcmp.eq.f32.partialorder %v445, 0.0
    %v451 = vand.u32 %v445, 2147483648
    %v452 = vsel %vm450, %v451, %v449
    %v453 = vmul.f32 %v433, %v433
    %454 = vadd.xlane.f32.xlu0 %v453
    %v455 = vpop.xlane.xlu0 %454
    %v456 = vmul.f32 %v279, %v433
    %457 = vadd.xlane.f32.xlu0 %v456
    %v458 = vpop.xlane.xlu0 %457
    %v459 = vadd.f32 %v282, %v455
    %v460 = vmul.f32 %v458, 2.0
    %v461 = vsub.f32 %v459, %v460
    %v462 = vmax.f32 %v461, 1e-12
    %v463 = vrsqrt.pop %v462
    %v464 = vmul.f32 %v462, %v463
    %vm465 = vcmp.eq.f32.partialorder %v462, inf
    %v466 = vsel %vm465, %v462, %v464
    %vm467 = vcmp.eq.f32.partialorder %v462, 0.0
    %v468 = vand.u32 %v462, 2147483648
    %v469 = vsel %vm467, %v468, %v466
    %v470 = vmax.f32 %v452, %v469
    %v471 = vsub.f32 %v452, %v470
    %v472 = vmul.f32 %v471, 1.442695
    %v473 = vpow.pop %v472
    %v474 = vsub.f32 %v469, %v470
    %v475 = vmul.f32 %v474, 1.442695
    %v476 = vpow.pop %v475
    %v477 = vadd.f32 %v473, %v476
    %v478 = vrcp.pop %v477
    %v479 = vmul.f32 %v473, %v478
    %v480 = vmul.f32 %v479, %v260
    %v481 = vmul.f32 %v476, %v478
    %v482 = vmul.f32 %v481, %v261
    %v483 = vadd.f32 %v480, %v482
    %v484 = vsub.f32 0.0, %v483
    %v485 = vlaneseq
    %v486 = vshrl.u32 %v485, 7
    %s487 = smul.u32 0, 8
    %v488 = vstv %s487
    %v489 = vadd.s32 %v486, %v488
    %vm490 = vcmp.lt.s32.totalorder %v489, 8
    %v491 = vsel %vm490, %v484, 0.0
    %vm492 = vcmask 7168
    %v493 = vsel %vm492, %v491, 0.0
    %494 = vadd.xlane.f32.xlu0 %v493
    %v495 = vpop.xlane.xlu0 %494
    %v496 = vrot.slane %v495, 4
    %v497 = vadd.f32 %v495, %v496
    %v498 = vrot.slane %v497, 2
    %v499 = vadd.f32 %v497, %v498
    %v500 = vrot.slane %v499, 1
    %v501 = vadd.f32 %v499, %v500
    %s502 = vtos %v501
    %v503 = vstv %s502
    %504 = vst [vmem:[#allocation7] sm:$0xff] %v503
    // Predicated region
    $region34: #{tpu_custom_call.1} parent=1 // pred_check
      _
    $region35: #{tpu_custom_call.1} parent=1 // pred_check_branch
      %506 = sbr.rel (0) target = $region37
    $region36: #{tpu_custom_call.1} parent=1 // pred_region
      %s508 = ssub.s32 128, 128
      %509 = vsyncadd [#allocation4], %s508
      %s511 = sshll.u32 [#allocation7], 4
      %s512 = int_to_ptr.vmem [resolvable:$true] %s511
      %514 = dma.vmem_to_hbm [thread:$0]  %s512, 128, %s6, [#allocation4]
    $region37: #{tpu_custom_call.1} parent=1 // pred_fallthru
      _
    // Predicated region
    $region38: #{tpu_custom_call.1} parent=1 // pred_check
      _
    $region39: #{tpu_custom_call.1} parent=1 // pred_check_branch
      %516 = sbr.rel (0) target = $region41
    $region40: #{tpu_custom_call.1} parent=1 // pred_region
      %517 = dma.done [#allocation4], 128
    $region41: #{tpu_custom_call.1} parent=1 // pred_fallthru
      _
    %518 = vsyncpa [#allocation3], 1
    %519 = vsyncpa [#allocation6], 1
    %520 = vsyncpa [#allocation4], 1

</llo_original>
